<compile_context>
chip_gen: v5e
topology: v5e:2x2
jax: 0.10.0
libtpu: 0.0.40
codegen_flags: <defaults>
</compile_context>

<pallas_src>
import functools

import jax
import jax.numpy as jnp
from jax.experimental import pallas as pl
from jax.experimental.pallas import tpu as pltpu

# ----------------------------- configuration --------------------------------
HID = 32          # hid_dim
PF = 64           # pf_dim
B = 2             # batch
T = 8             # seq len
SUBLANE = 8       # TPU sublane width


# ------------------------------ Pallas kernel --------------------------------
def ffn_kernel(x_ref, p_ref, o_ref, *, hid, pf):
    """Fused position-wise FFN over the whole (flattened) batch.

    x_ref: [R, hid]             activations (R = B*T rows, sublane-aligned)
    p_ref: [hid + pf + 2, pf]   packed parameter slab:
             rows [0, hid)        -> fc_1 weight  [hid, pf]
             rows [hid, hid+pf)   -> fc_2 weight  (cols :hid used, rest zero)
             row  hid + pf        -> fc_1 bias    [pf]
             row  hid + pf + 1    -> fc_2 bias    (cols :hid used, rest zero)
    o_ref: [R, hid]             output
    """
    x = x_ref[...]
    w1 = p_ref[0:hid, :]                        # [hid, pf]
    w2 = p_ref[hid:hid + pf, :]                 # [pf, pf]  (cols hid: are zero)
    b1 = p_ref[hid + pf:hid + pf + 1, :]        # [1, pf]
    b2 = p_ref[hid + pf + 1:hid + pf + 2, :]    # [1, pf]   (cols hid: are zero)

    h = jnp.dot(x, w1, preferred_element_type=jnp.float32) + b1
    h = jnp.maximum(h, 0.0)                     # relu
    # TODO(synk): dropout is identity (inference / eval mode); a training-mode
    # version needs pltpu.prng_seed + pltpu.prng_random_bits masking here.
    y = jnp.dot(h, w2, preferred_element_type=jnp.float32) + b2   # [R, pf]
    o_ref[...] = y[:, :hid].astype(o_ref.dtype)                   # [R, hid]


# --------------------- one-time parameter packing (init time) ----------------
def pack_ffn_params(w1, b1, w2, b2):
    """Pack all FFN parameters into one VMEM-friendly slab.  Call ONCE at
    parameter-init time, not per forward (zero-padding is a math no-op:
    relu(0)=0 and zero fc_2 columns contribute nothing)."""
    hid, pf = w1.shape
    slab = jnp.zeros((hid + pf + 2, pf), jnp.float32)
    slab = slab.at[0:hid, :].set(w1.astype(jnp.float32))
    slab = slab.at[hid:hid + pf, 0:hid].set(w2.astype(jnp.float32))
    slab = slab.at[hid + pf, :].set(b1.astype(jnp.float32))
    slab = slab.at[hid + pf + 1, 0:hid].set(b2.astype(jnp.float32))
    return slab


# ------------------------------ wrapper ---------------------------------------
def positionwise_ffn(x, params):
    """x: [B, T, HID] float32; params: packed slab from pack_ffn_params."""
    bx, tx, hid = x.shape
    pf = params.shape[1]
    rows = bx * tx

    x2 = x.reshape(rows, hid).astype(jnp.float32)
    rows_pad = -(-rows // SUBLANE) * SUBLANE
    if rows_pad != rows:   # not taken for B*T=16; kept for generality
        x2 = jnp.zeros((rows_pad, hid), jnp.float32).at[:rows].set(x2)

    flops = 4 * rows_pad * hid * pf                       # two matmuls
    bytes_accessed = 4 * (2 * rows_pad * hid + params.size)

    vmem = pl.BlockSpec(memory_space=pltpu.MemorySpace.VMEM)
    out = pl.pallas_call(
        functools.partial(ffn_kernel, hid=hid, pf=pf),
        out_shape=jax.ShapeDtypeStruct((rows_pad, hid), jnp.float32),
        in_specs=[vmem, vmem],
        out_specs=vmem,
        cost_estimate=pl.CostEstimate(
            flops=flops, transcendentals=0, bytes_accessed=bytes_accessed),
    )(x2, params)

    if rows_pad != rows:
        out = out[:rows]
    return out.reshape(bx, tx, hid)


# ------------------------------ reference (pure JAX) -------------------------
def ffn_reference(x, w1, b1, w2, b2):
    h = jnp.maximum(x @ w1 + b1, 0.0)      # dropout = identity (eval mode)
    return h @ w2 + b2


# ----------------------------------- main -------------------------------------
if __name__ == "__main__":
    root = jax.random.PRNGKey(0)
    kx, k1, kb1, k2, kb2 = jax.random.split(root, 5)

    x = (0.5 * jax.random.normal(kx, (B, T, HID))).astype(jnp.float32)
    w1 = (0.1 * jax.random.normal(k1, (HID, PF))).astype(jnp.float32)
    b1 = (0.1 * jax.random.normal(kb1, (PF,))).astype(jnp.float32)
    w2 = (0.1 * jax.random.normal(k2, (PF, HID))).astype(jnp.float32)
    b2 = (0.1 * jax.random.normal(kb2, (HID,))).astype(jnp.float32)

    # One-time parameter packing (init-time, not per forward).
    params = jax.block_until_ready(pack_ffn_params(w1, b1, w2, b2))

    out = positionwise_ffn(x, params)
    out = jax.block_until_ready(out)

    ref = ffn_reference(x, w1, b1, w2, b2)

    assert out.shape == (B, T, HID)
    assert jnp.allclose(out, ref, rtol=1e-4, atol=1e-4), "FFN output mismatch"

    print("KERNEL_OK")
</pallas_src>

<mosaic_0001>
module attributes {stable_mosaic.version = 11 : i64} {
  func.func @ffn_kernel(%arg0: memref<16x32xf32, #tpu.memory_space<vmem>>, %arg1: memref<98x64xf32, #tpu.memory_space<vmem>>, %arg2: memref<16x32xf32, #tpu.memory_space<vmem>>) attributes {dimension_semantics = [], scalar_prefetch = 0 : i64, scratch_operands = 0 : i64, tpu.core_type = #tpu.core_type<tc>} {
    %c0 = arith.constant 0 : index
    %c0_0 = arith.constant 0 : index
    %0 = vector.load %arg0[%c0, %c0_0] : memref<16x32xf32, #tpu.memory_space<vmem>>, vector<16x32xf32>
    %c0_1 = arith.constant 0 : index
    %c0_2 = arith.constant 0 : index
    %1 = vector.load %arg1[%c0_1, %c0_2] : memref<98x64xf32, #tpu.memory_space<vmem>>, vector<32x64xf32>
    %c32 = arith.constant 32 : index
    %c0_3 = arith.constant 0 : index
    %2 = vector.load %arg1[%c32, %c0_3] : memref<98x64xf32, #tpu.memory_space<vmem>>, vector<64x64xf32>
    %c96 = arith.constant 96 : index
    %c0_4 = arith.constant 0 : index
    %3 = vector.load %arg1[%c96, %c0_4] : memref<98x64xf32, #tpu.memory_space<vmem>>, vector<1x64xf32>
    %c97 = arith.constant 97 : index
    %c0_5 = arith.constant 0 : index
    %4 = vector.load %arg1[%c97, %c0_5] : memref<98x64xf32, #tpu.memory_space<vmem>>, vector<1x64xf32>
    %cst = arith.constant dense<0.000000e+00> : vector<16x64xf32>
    %5 = tpu.matmul %0, %1, %cst {dimension_numbers = #tpu.dot_dimension_numbers<[1], [0], [0], [1], [0, 0, 1, 1], [], []>} : vector<16x32xf32>, vector<32x64xf32>, vector<16x64xf32> -> vector<16x64xf32>
    %6 = vector.broadcast %3 : vector<1x64xf32> to vector<16x64xf32>
    %7 = arith.addf %5, %6 : vector<16x64xf32>
    %cst_6 = arith.constant 0.000000e+00 : f32
    %8 = vector.broadcast %cst_6 : f32 to vector<16x64xf32>
    %9 = arith.maximumf %7, %8 : vector<16x64xf32>
    %cst_7 = arith.constant dense<0.000000e+00> : vector<16x64xf32>
    %10 = tpu.matmul %9, %2, %cst_7 {dimension_numbers = #tpu.dot_dimension_numbers<[1], [0], [0], [1], [0, 0, 1, 1], [], []>} : vector<16x64xf32>, vector<64x64xf32>, vector<16x64xf32> -> vector<16x64xf32>
    %11 = vector.broadcast %4 : vector<1x64xf32> to vector<16x64xf32>
    %12 = arith.addf %10, %11 : vector<16x64xf32>
    %13 = vector.extract_strided_slice %12 {offsets = [0, 0], sizes = [16, 32], strides = [1, 1]} : vector<16x64xf32> to vector<16x32xf32>
    %c0_8 = arith.constant 0 : index
    %c0_9 = arith.constant 0 : index
    %14 = vector.load %arg2[%c0_8, %c0_9] : memref<16x32xf32, #tpu.memory_space<vmem>>, vector<16x32xf32>
    tpu.vector_store %arg2[%c0_8, %c0_9], %13 {strides = array<i32>} : memref<16x32xf32, #tpu.memory_space<vmem>>, vector<16x32xf32>,
    return
  }
}

</mosaic_0001>

<llo_original>
// kernel: tpu_custom_call.1
$region0: #{tpu_custom_call.1}
  #allocation0 [shape = 'u32[]', space=smem, size = 0x4, offset = 0x4, fixed_abs, tag = 'smem constant byte address 0x4 - core index']
  #allocation1 [shape = 'u32[72,128]{1,0:T(1,128)}', space=vmem, size = 0x9000, scoped, tag = 'internal scratch']
  %s0 = inlined_call_operand.vmem [shape: f32[16,32], index: 0, kind: input, shape index: {}]
  %s1 = inlined_call_operand.vmem [shape: f32[98,64], index: 1, kind: input, shape index: {}]
  %s2 = inlined_call_operand.hbm [shape: f32[16,32], index: 2, kind: output, shape index: {}]
  %s3 = sld [smem:[#allocation0]]
  $region18: #{tpu_custom_call.1} parent=0
    _
  %s5 = ssub.s32 1, %s3
  %s6 = scalar_select 0, %s5, %s3
  $region1: #{tpu_custom_call.1} parent=0
    #allocation2 [shape = 'u8[8192]{0}', space=vmem, size = 0x2000, scoped, tag = 'output window, operand 0, single buffered']
    #allocation3 [shape = 's32[1]{0}', space=sflag, size = 0x4, scoped, tag = 'scoped memory for tpu_custom_call.1']
    %7 = vsyncpa [#allocation3], 0
    // Predicated region
    $region2: #{tpu_custom_call.1} parent=1 // pred_check
      _
    $region3: #{tpu_custom_call.1} parent=1 // pred_check_branch
      %9 = sbr.rel (0) target = $region5
    $region4: #{tpu_custom_call.1} parent=1 // pred_region
      _
    $region5: #{tpu_custom_call.1} parent=1 // pred_fallthru
      _
    // Predicated region
    $region6: #{tpu_custom_call.1} parent=1 // pred_check
      _
    $region7: #{tpu_custom_call.1} parent=1 // pred_check_branch
      %11 = sbr.rel (0) target = $region9
    $region8: #{tpu_custom_call.1} parent=1 // pred_region
      _
    $region9: #{tpu_custom_call.1} parent=1 // pred_fallthru
      _
    %v12 = vld [vmem:[%s0] sm:$0xff]
    %v13 = vld [vmem:[%s0 + $0x8] sm:$0xff]
    %v14 = vld [vmem:[%s1] sm:$0xff]
    %v15 = vld [vmem:[%s1 + $0x8] sm:$0xff]
    %v16 = vld [vmem:[%s1 + $0x10] sm:$0xff]
    %v17 = vld [vmem:[%s1 + $0x18] sm:$0xff]
    %v18 = vld [vmem:[%s1 + $0x20] sm:$0xff]
    %v19 = vld [vmem:[%s1 + $0x28] sm:$0xff]
    %v20 = vld [vmem:[%s1 + $0x30] sm:$0xff]
    %v21 = vld [vmem:[%s1 + $0x38] sm:$0xff]
    %v22 = vld [vmem:[%s1 + $0x40] sm:$0xff]
    %v23 = vld [vmem:[%s1 + $0x48] sm:$0xff]
    %v24 = vld [vmem:[%s1 + $0x50] sm:$0xff]
    %v25 = vld [vmem:[%s1 + $0x58] sm:$0xff]
    %v26 = vld [vmem:[%s1 + $0x60] sm:$0x1]
    %v27 = vld [vmem:[%s1 + $0x61] sm:$0x1]
    %v28 = vperm.slane %v26, 0
    %vm29 = vcmask 261120
    %v31 = vsel %vm29, %v12, 0
    %v34 = vsel %vm29, %v13, 0
    %36 = vmatpush.msra.mxu0 0.0
    %37 = vmatpush.msra.mxu0 0.0
    %38 = vmatpush.msra.mxu0 0.0
    %39 = vmatpush.msra.mxu0 0.0
    %40 = vmatpush.msra.mxu0 0.0
    %41 = vmatpush.msra.mxu0 0.0
    %42 = vmatpush.msra.mxu0 0.0
    %43 = vmatpush.msra.mxu0 0.0
    %44 = vmatpush.msra.mxu0 0.0
    %45 = vmatpush.msra.mxu0 0.0
    %46 = vmatpush.msra.mxu0 0.0
    %47 = vmatpush.msra.mxu0 0.0
    %48 = vmatpush.msra.mxu0 %v17
    %49 = vmatpush.msra.mxu0 %v16
    %50 = vmatpush.msra.mxu0 %v15
    %51 = vmatpush.msra.mxu0 %v14
    %52 = vmatmul.f32.gmra.mxu0 %v31
    %v53 = vpop.f32.mrf.mxu0
    %v54 = vadd.f32 %v28, %v53
    %55 = vmatmul.f32.gmra.mxu0 %v34
    %v56 = vpop.f32.mrf.mxu0
    %v57 = vadd.f32 %v28, %v56
    %58 = vdwg.mxu0
    %v59 = vmax.f32 %v54, 0.0
    %v60 = vmax.f32 %v57, 0.0
    %v61 = vperm.slane %v27, 0
    %vm62 = vcmask 523264
    %v64 = vsel %vm62, %v59, 0
    %v67 = vsel %vm62, %v60, 0
    %69 = vmatpush.msra.mxu0 0.0
    %70 = vmatpush.msra.mxu0 0.0
    %71 = vmatpush.msra.mxu0 0.0
    %72 = vmatpush.msra.mxu0 0.0
    %73 = vmatpush.msra.mxu0 0.0
    %74 = vmatpush.msra.mxu0 0.0
    %75 = vmatpush.msra.mxu0 0.0
    %76 = vmatpush.msra.mxu0 0.0
    %77 = vmatpush.msra.mxu0 %v25
    %78 = vmatpush.msra.mxu0 %v24
    %79 = vmatpush.msra.mxu0 %v23
    %80 = vmatpush.msra.mxu0 %v22
    %81 = vmatpush.msra.mxu0 %v21
    %82 = vmatpush.msra.mxu0 %v20
    %83 = vmatpush.msra.mxu0 %v19
    %84 = vmatpush.msra.mxu0 %v18
    %85 = vmatmul.f32.gmra.mxu0 %v64
    %v86 = vpop.f32.mrf.mxu0
    %v87 = vadd.f32 %v61, %v86
    %88 = vmatmul.f32.gmra.mxu0 %v67
    %v89 = vpop.f32.mrf.mxu0
    %v90 = vadd.f32 %v61, %v89
    %91 = vdwg.mxu0
    %92 = vst.msk [vmem:[#allocation2] sm:$0xff] %vm29, %v87
    %93 = vst.msk [vmem:[#allocation2 + $0x8] sm:$0xff] %vm29, %v90
    // Predicated region
    $region10: #{tpu_custom_call.1} parent=1 // pred_check
      _
    $region11: #{tpu_custom_call.1} parent=1 // pred_check_branch
      %95 = sbr.rel (0) target = $region13
    $region12: #{tpu_custom_call.1} parent=1 // pred_region
      %97 = vsyncadd [#allocation3], 0
      %s98 = sshll.u32 [#allocation2], 4
      %s99 = int_to_ptr.vmem [resolvable:$true] %s98
      %s100 = sshll.u32 %s2, 4
      %s101 = int_to_ptr.hbm [resolvable:$true] %s100
      %106 = dma.vmem_to_hbm [thread:$0]  %s99, 256, %s101, [#allocation3], 128, 128, 8
    $region13: #{tpu_custom_call.1} parent=1 // pred_fallthru
      _
    // Predicated region
    $region14: #{tpu_custom_call.1} parent=1 // pred_check
      _
    $region15: #{tpu_custom_call.1} parent=1 // pred_check_branch
      %108 = sbr.rel (0) target = $region17
    $region16: #{tpu_custom_call.1} parent=1 // pred_region
      %110 = dma.done [#allocation3], 256
    $region17: #{tpu_custom_call.1} parent=1 // pred_fallthru
      _
    %111 = vsyncpa [#allocation3], 1

</llo_original>
